<compile_context>
chip_gen: v7x
topology: tpu7x:2x2x1
jax: 0.10.0
libtpu: 0.0.40
codegen_flags: <defaults>
</compile_context>

<pallas_src>
import math

import jax
import jax.numpy as jnp
from jax import lax
from jax.experimental import pallas as pl
from jax.experimental.pallas import tpu as pltpu

_LANE_BLOCK = 1024            # lane width of a tile (multiple of 128)
_MAX_BLOCK_ELEMS = 1024 * 1024  # ~4 MiB of f32 per input block (v7x-portable; 2x on v5e/v6e is safe)
_MIN_PALLAS_ELEMS = 64 * 1024   # below this, the fused XLA path wins
_CHUNK_ROWS = 8                 # sublane chunk streamed through the vreg accumulator
_CHUNK_UNROLL = 4


def _round_up(x, m):
    return ((x + m - 1) // m) * m


def _make_kernel(*, R, C, br, bc, out_bc, chunk, n_chunks, row_mask, col_mask,
                 binary_targets, unroll):
    """Kernel specialized (at Python time) for one tiling configuration."""

    def kernel(pred_ref, target_ref, out_ref):
        row0 = pl.program_id(0) * br
        col0 = pl.program_id(1) * bc

        col_ok = None
        if col_mask:
            col_ok = (lax.broadcasted_iota(jnp.int32, (chunk, bc), 1) + col0) < C

        def chunk_contrib(r0):
            p = pred_ref[pl.ds(r0, chunk), :].astype(jnp.float32)
            t = target_ref[pl.ds(r0, chunk), :].astype(jnp.float32)
            # target_vad[target_vad == 2] = 1
            t = jnp.where(t == 2.0, 1.0, t)
            scale = 0.28 * t - 0.64            # == -(0.36*t + 0.64*(1 - t))
            if binary_targets:
                # Valid for t in {0, 1} after the 2->1 mapping: one log per element.
                x = jnp.where(t >= 0.5, p, 1.0 - p)
                contrib = scale * jnp.maximum(jnp.log(x), -100.0)
            else:
                # General algebra (also correct for fractional targets).
                log_p = jnp.maximum(jnp.log(p), -100.0)
                log_1mp = jnp.maximum(jnp.log(1.0 - p), -100.0)
                contrib = scale * (log_1mp + t * (log_p - log_1mp))
            if row_mask or col_mask:
                ok = None
                if row_mask:
                    rows = lax.broadcasted_iota(jnp.int32, (chunk, bc), 0) + (row0 + r0)
                    ok = rows < R
                if col_mask:
                    ok = col_ok if ok is None else jnp.logical_and(ok, col_ok)
                # select: garbage (NaN/Inf) from out-of-bounds block tails never propagates
                contrib = jnp.where(ok, contrib, 0.0)
            return contrib

        if n_chunks == 1:
            acc = chunk_contrib(0)
        else:
            acc = lax.fori_loop(
                0, n_chunks,
                lambda k, a: a + chunk_contrib(pl.multiple_of(k * chunk, chunk)),
                jnp.zeros((chunk, bc), jnp.float32),
                unroll=unroll)

        if out_bc != bc:
            # bc is a multiple of 128 here: fold lane groups with static, lane-aligned
            # slices (each slice is a whole vreg column group -> pure VPU adds, no XLU).
            red = acc[:, :out_bc]
            for g in range(1, bc // out_bc):
                red = red + acc[:, g * out_bc:(g + 1) * out_bc]
            out_ref[...] = red
        else:
            out_ref[...] = acc

    return kernel


def _weighted_bce_sum_2d(pred2d, target2d, *, binary_targets):
    """2-D inputs of identical shape -> scalar f32 weighted-BCE sum (Pallas path)."""
    R, C = pred2d.shape

    # ---- lane (last-dim) block: full dim if it fits, else 1024-lane tiles + tail mask ----
    bc = C if C <= _LANE_BLOCK else _LANE_BLOCK
    gc = pl.cdiv(C, bc)
    col_mask = (C % bc) != 0

    # ---- sublane (row) block: multiple of 8, sized for ~4 MiB f32 per input block ----
    max_rows = max(8, (_MAX_BLOCK_ELEMS // bc) // 8 * 8)
    if R < 8:
        br = R                                  # full dim (allowed for any size)
    else:
        br = min((R // 8) * 8, max_rows)
        if gc == 1 and br >= R and R >= 16:
            # Whole problem would be a single block: split rows so the "parallel" grid
            # has >= 2 blocks and v7x megacore can use both TensorCores.
            br = _round_up(pl.cdiv(R, 2), 8)
    gr = pl.cdiv(R, br)
    row_mask = (R % br) != 0

    chunk = _CHUNK_ROWS if br % _CHUNK_ROWS == 0 else br
    n_chunks = br // chunk
    out_bc = 128 if (bc % 128 == 0 and bc > 128) else bc

    kernel = _make_kernel(R=R, C=C, br=br, bc=bc, out_bc=out_bc, chunk=chunk,
                          n_chunks=n_chunks, row_mask=row_mask, col_mask=col_mask,
                          binary_targets=binary_targets,
                          unroll=min(_CHUNK_UNROLL, max(1, n_chunks)))

    partials = pl.pallas_call(
        kernel,
        out_shape=jax.ShapeDtypeStruct((gr * chunk, gc * out_bc), jnp.float32),
        grid_spec=pltpu.PrefetchScalarGridSpec(
            num_scalar_prefetch=0,
            grid=(gr, gc),
            in_specs=[
                pl.BlockSpec((br, bc), lambda i, j: (i, j)),
                pl.BlockSpec((br, bc), lambda i, j: (i, j)),
            ],
            out_specs=pl.BlockSpec((chunk, out_bc), lambda i, j: (i, j)),
        ),
        compiler_params=pltpu.CompilerParams(
            dimension_semantics=("parallel", "parallel"),
            # 16 MiB of double-buffered inputs + small scratch; headroom on every gen.
            # (On v5e/v6e one may double _MAX_BLOCK_ELEMS and raise this to ~64 MiB.)
            vmem_limit_bytes=32 * 1024 * 1024,
        ),
    )(pred2d, target2d)

    return jnp.sum(partials, dtype=jnp.float32)


def _bce_weighted_sum_jnp(pred, target):
    """Fused XLA fallback for small problems (general algebra)."""
    p = pred.astype(jnp.float32)
    t = target.astype(jnp.float32)
    t = jnp.where(t == 2.0, 1.0, t)
    log_p = jnp.maximum(jnp.log(p), -100.0)
    log_1mp = jnp.maximum(jnp.log(1.0 - p), -100.0)
    return jnp.sum((0.28 * t - 0.64) * (log_1mp + t * (log_p - log_1mp)),
                   dtype=jnp.float32)


def bce_loss_mean(pred_vad, target_vad, *, binary_targets=True,
                  min_pallas_elems=_MIN_PALLAS_ELEMS):
    """pred_vad, target_vad: [B, num_frames] (any float/int dtype). Scalar f32 loss.

    binary_targets=True assumes targets are in {0, 1, 2} (as the module's 2->1 mapping
    implies); set False for fractional targets.
    """
    assert pred_vad.shape == target_vad.shape
    shape = pred_vad.shape
    n = math.prod(shape) if shape else 1
    lead = math.prod(shape[:-2]) if len(shape) > 2 else 1

    if n == 0 or n < min_pallas_elems:
        total = _bce_weighted_sum_jnp(pred_vad, target_vad)
    elif n % _LANE_BLOCK == 0:
        # Free (layout-preserving) reshape to a fully lane/sublane-dense slab.
        total = _weighted_bce_sum_2d(
            pred_vad.reshape(n // _LANE_BLOCK, _LANE_BLOCK),
            target_vad.reshape(n // _LANE_BLOCK, _LANE_BLOCK),
            binary_targets=binary_targets)
    else:
        # Ragged total element count: run on the natural 2-D layout (no pad, no copy);
        # ragged block tails are masked in-kernel.
        if len(shape) == 1:
            p2, t2 = pred_vad.reshape(1, -1), target_vad.reshape(1, -1)
        else:
            p2 = pred_vad.reshape(-1, shape[-1])
            t2 = target_vad.reshape(-1, shape[-1])
        total = _weighted_bce_sum_2d(p2, t2, binary_targets=binary_targets)

    return total / lead if lead != 1 else total


def _reference(pred_vad, target_vad):
    """Literal transcription of the PyTorch module (unfused), for checking."""
    t = target_vad.astype(jnp.float32)
    t = jnp.where(t == 2.0, 1.0, t)
    p = pred_vad.astype(jnp.float32)
    bce = -(t * jnp.maximum(jnp.log(p), -100.0)
            + (1.0 - t) * jnp.maximum(jnp.log(1.0 - p), -100.0))
    weight = t * 0.36 + 0.64 * (1.0 - t)
    total = jnp.sum(bce * weight, axis=(-1, -2))
    return jnp.mean(total.astype(jnp.float32))


if __name__ == "__main__":
    key = jax.random.PRNGKey(0)

    def make_inputs(k, shape, fractional=False):
        k1, k2 = jax.random.split(k)
        pred = jax.nn.sigmoid(jax.random.normal(k1, shape, dtype=jnp.float32))
        if fractional:
            target = jax.random.uniform(k2, shape, dtype=jnp.float32)
        else:
            target = jax.random.randint(k2, shape, 0, 3, dtype=jnp.int32)
        return pred, target

    # Primary shape from the module docstring: [B, num_frames]
    B, num_frames = 2, 256
    key, sub = jax.random.split(key)
    pred_vad, target_vad = make_inputs(sub, (B, num_frames))
    ref = jax.block_until_ready(_reference(pred_vad, target_vad))

    # Default dispatch (tiny -> fused XLA path) and forced Pallas path at the same shape.
    out_default = jax.block_until_ready(bce_loss_mean(pred_vad, target_vad))
    out_pallas = jax.block_until_ready(
        bce_loss_mean(pred_vad, target_vad, min_pallas_elems=0))
    assert out_pallas.shape == () and out_pallas.dtype == jnp.float32
    assert jnp.allclose(out_default, ref, rtol=1e-4, atol=1e-3), (out_default, ref)
    assert jnp.allclose(out_pallas, ref, rtol=1e-4, atol=1e-3), (out_pallas, ref)

    # Extra small configurations exercising: the lane-dense flat path, ragged-row masking +
    # the in-kernel chunk loop, ragged-lane masking, and the general (non-binary) algebra.
    extra_cases = [
        ((6, 1024), True),    # n % 1024 == 0 -> flat lane-dense path
        ((40, 300), True),    # ragged rows -> row masking + fori_loop chunks
        ((4, 2200), True),    # wide ragged frames -> lane-tile masking
        ((40, 300), False),   # fractional targets, general 2-log algebra
    ]
    for shape, binary in extra_cases:
        key, sub = jax.random.split(key)
        p, t = make_inputs(sub, shape, fractional=not binary)
        r = jax.block_until_ready(_reference(p, t))
        o = jax.block_until_ready(
            bce_loss_mean(p, t, binary_targets=binary, min_pallas_elems=0))
        assert jnp.allclose(o, r, rtol=1e-4, atol=1e-3), (shape, binary, o, r)

    print("KERNEL_OK")
</pallas_src>

<mosaic_0001>
module attributes {stable_mosaic.version = 11 : i64} {
  func.func @kernel(%arg0: i32, %arg1: i32, %arg2: memref<2x256xf32, #tpu.memory_space<vmem>>, %arg3: memref<2x256xi32, #tpu.memory_space<vmem>>, %arg4: memref<2x128xf32, #tpu.memory_space<vmem>>) attributes {dimension_semantics = [#tpu.dimension_semantics<parallel>, #tpu.dimension_semantics<parallel>], iteration_bounds = array<i64: 1, 1>, scalar_prefetch = 0 : i64, scratch_operands = 0 : i64, tpu.core_type = #tpu.core_type<tc>, window_params = [{transform_indices = @transform_0, window_bounds = array<i64: 2, 256>}, {transform_indices = @transform_1, window_bounds = array<i64: 2, 256>}, {transform_indices = @transform_2, window_bounds = array<i64: 2, 128>}]} {
    %c0 = arith.constant 0 : index
    %c0_0 = arith.constant 0 : index
    %0 = vector.load %arg2[%c0, %c0_0] : memref<2x256xf32, #tpu.memory_space<vmem>>, vector<2x256xf32>
    %c0_1 = arith.constant 0 : index
    %c0_2 = arith.constant 0 : index
    %1 = vector.load %arg3[%c0_1, %c0_2] : memref<2x256xi32, #tpu.memory_space<vmem>>, vector<2x256xi32>
    %2 = arith.sitofp %1 : vector<2x256xi32> to vector<2x256xf32>
    %cst = arith.constant 2.000000e+00 : f32
    %3 = vector.broadcast %cst : f32 to vector<2x256xf32>
    %4 = arith.cmpf oeq, %2, %3 : vector<2x256xf32>
    %cst_3 = arith.constant 1.000000e+00 : f32
    %5 = vector.broadcast %cst_3 : f32 to vector<2x256xf32>
    %6 = arith.select %4, %5, %2 : vector<2x256xi1>, vector<2x256xf32>
    %cst_4 = arith.constant 2.800000e-01 : f32
    %7 = vector.broadcast %cst_4 : f32 to vector<2x256xf32>
    %8 = arith.mulf %7, %6 : vector<2x256xf32>
    %cst_5 = arith.constant 6.400000e-01 : f32
    %9 = vector.broadcast %cst_5 : f32 to vector<2x256xf32>
    %10 = arith.subf %8, %9 : vector<2x256xf32>
    %cst_6 = arith.constant 5.000000e-01 : f32
    %11 = vector.broadcast %cst_6 : f32 to vector<2x256xf32>
    %12 = arith.cmpf oge, %6, %11 : vector<2x256xf32>
    %cst_7 = arith.constant 1.000000e+00 : f32
    %13 = vector.broadcast %cst_7 : f32 to vector<2x256xf32>
    %14 = arith.subf %13, %0 : vector<2x256xf32>
    %15 = arith.select %12, %0, %14 : vector<2x256xi1>, vector<2x256xf32>
    %16 = math.log %15 : vector<2x256xf32>
    %cst_8 = arith.constant -1.000000e+02 : f32
    %17 = vector.broadcast %cst_8 : f32 to vector<2x256xf32>
    %18 = arith.maximumf %16, %17 : vector<2x256xf32>
    %19 = arith.mulf %10, %18 : vector<2x256xf32>
    %20 = vector.extract_strided_slice %19 {offsets = [0, 0], sizes = [2, 128], strides = [1, 1]} : vector<2x256xf32> to vector<2x128xf32>
    %21 = vector.extract_strided_slice %19 {offsets = [0, 128], sizes = [2, 128], strides = [1, 1]} : vector<2x256xf32> to vector<2x128xf32>
    %22 = arith.addf %20, %21 : vector<2x128xf32>
    %c0_9 = arith.constant 0 : index
    %c0_10 = arith.constant 0 : index
    %23 = vector.load %arg4[%c0_9, %c0_10] : memref<2x128xf32, #tpu.memory_space<vmem>>, vector<2x128xf32>
    tpu.vector_store %arg4[%c0_9, %c0_10], %22 {strides = array<i32>} : memref<2x128xf32, #tpu.memory_space<vmem>>, vector<2x128xf32>,
    return
  }
  func.func @transform_0(%arg0: i32, %arg1: i32) -> (i32, i32) {
    %c0_i32 = arith.constant 0 : i32
    return %arg0, %arg1 : i32, i32
  }
  func.func @transform_1(%arg0: i32, %arg1: i32) -> (i32, i32) {
    %c0_i32 = arith.constant 0 : i32
    return %arg0, %arg1 : i32, i32
  }
  func.func @transform_2(%arg0: i32, %arg1: i32) -> (i32, i32) {
    %c0_i32 = arith.constant 0 : i32
    return %arg0, %arg1 : i32, i32
  }
}

</mosaic_0001>

<llo_original>
// kernel: tpu_custom_call.1
$region0: #{tpu_custom_call.1}
  #allocation0 [shape = 'u32[]', space=smem, size = 0x4, offset = 0x4, fixed_abs, tag = 'smem constant byte address 0x4 - core index']
  #allocation1 [shape = 'u32[144,128]{1,0:T(1,128)}', space=vmem, size = 0x12000, scoped, tag = 'internal scratch']
  %s0 = inlined_call_operand.hbm [shape: f32[2,256], index: 0, kind: input, shape index: {}]
  %s1 = inlined_call_operand.hbm [shape: s32[2,256], index: 1, kind: input, shape index: {}]
  %s2 = inlined_call_operand.hbm [shape: f32[2,128], index: 2, kind: output, shape index: {}]
  %s3 = sld [smem:[#allocation0]]
  $region26: #{tpu_custom_call.1} parent=0
    _
  %s5 = ssub.s32 1, %s3
  %s6 = scalar_select 0, %s5, %s3
  $region1: #{tpu_custom_call.1} parent=0
    #allocation2 [shape = 'u8[2048]{0}', space=vmem, size = 0x800, scoped, tag = 'input window, operand 0, single buffered']
    #allocation3 [shape = 's32[1]{0}', space=sflag, size = 0x4, scoped, tag = 'scoped memory for tpu_custom_call.1']
    #allocation4 [shape = 's32[1]{0}', space=sflag, size = 0x4, scoped, tag = 'scoped memory for tpu_custom_call.1']
    #allocation5 [shape = 'u8[2048]{0}', space=vmem, size = 0x800, scoped, tag = 'input window, operand 1, single buffered']
    #allocation6 [shape = 's32[1]{0}', space=sflag, size = 0x4, scoped, tag = 'scoped memory for tpu_custom_call.1']
    #allocation7 [shape = 'u8[1024]{0}', space=vmem, size = 0x400, scoped, tag = 'output window, operand 0, single buffered']
    %7 = vsyncpa [#allocation3], 0
    %8 = vsyncpa [#allocation6], 0
    %9 = vsyncpa [#allocation4], 0
    // Predicated region
    $region2: #{tpu_custom_call.1} parent=1 // pred_check
      _
    $region3: #{tpu_custom_call.1} parent=1 // pred_check_branch
      %11 = sbr.rel (0) target = $region5
    $region4: #{tpu_custom_call.1} parent=1 // pred_region
      %s13 = ssub.s32 64, 64
      %14 = vsyncadd [#allocation3], %s13
      %s16 = sshll.u32 [#allocation2], 4
      %s17 = int_to_ptr.vmem [resolvable:$true] %s16
      %19 = dma.hbm_to_vmem [thread:$0]  %s0, 64, %s17, [#allocation3]
    $region5: #{tpu_custom_call.1} parent=1 // pred_fallthru
      _
    // Predicated region
    $region6: #{tpu_custom_call.1} parent=1 // pred_check
      _
    $region7: #{tpu_custom_call.1} parent=1 // pred_check_branch
      %21 = sbr.rel (0) target = $region9
    $region8: #{tpu_custom_call.1} parent=1 // pred_region
      %s23 = ssub.s32 64, 64
      %24 = vsyncadd [#allocation6], %s23
      %s26 = sshll.u32 [#allocation5], 4
      %s27 = int_to_ptr.vmem [resolvable:$true] %s26
      %29 = dma.hbm_to_vmem [thread:$0]  %s1, 64, %s27, [#allocation6]
    $region9: #{tpu_custom_call.1} parent=1 // pred_fallthru
      _
    // Predicated region
    $region10: #{tpu_custom_call.1} parent=1 // pred_check
      _
    $region11: #{tpu_custom_call.1} parent=1 // pred_check_branch
      %31 = sbr.rel (0) target = $region13
    $region12: #{tpu_custom_call.1} parent=1 // pred_region
      %32 = dma.done [#allocation3], 64
    $region13: #{tpu_custom_call.1} parent=1 // pred_fallthru
      _
    // Predicated region
    $region14: #{tpu_custom_call.1} parent=1 // pred_check
      _
    $region15: #{tpu_custom_call.1} parent=1 // pred_check_branch
      %34 = sbr.rel (0) target = $region17
    $region16: #{tpu_custom_call.1} parent=1 // pred_region
      %35 = dma.done [#allocation6], 64
    $region17: #{tpu_custom_call.1} parent=1 // pred_fallthru
      _
    %v36 = vld [vmem:[#allocation2] sm:$0xf]
    %v37 = vld [vmem:[#allocation5] sm:$0xf]
    %v38 = vcvt.s32.f32 %v37
    %vm39 = vcmp.eq.f32.partialorder %v38, 2.0
    %v40 = vsel %vm39, 1.0, %v38
    %v41 = vmul.f32 %v40, 0.28
    %v42 = vsub.f32 %v41, 0.64
    %vm43 = vcmp.ge.f32.partialorder %v40, 0.5
    %v44 = vsub.f32 1.0, %v36
    %v45 = vsel %vm43, %v36, %v44
    %v46 = vlog2.pop %v45
    %v47 = vmul.f32 %v46, 0.6931472
    %v48 = vmax.f32 %v47, -100.0
    %v49 = vmul.f32 %v42, %v48
    %v51 = vrot.slane %v49, 2
    %v53 = vadd.f32 %v49, %v51
    %54 = vst [vmem:[#allocation7] sm:$0x3] %v53
    // Predicated region
    $region18: #{tpu_custom_call.1} parent=1 // pred_check
      _
    $region19: #{tpu_custom_call.1} parent=1 // pred_check_branch
      %56 = sbr.rel (0) target = $region21
    $region20: #{tpu_custom_call.1} parent=1 // pred_region
      %s58 = ssub.s32 32, 32
      %59 = vsyncadd [#allocation4], %s58
      %s61 = sshll.u32 [#allocation7], 4
      %s62 = int_to_ptr.vmem [resolvable:$true] %s61
      %64 = dma.vmem_to_hbm [thread:$0]  %s62, 32, %s2, [#allocation4]
    $region21: #{tpu_custom_call.1} parent=1 // pred_fallthru
      _
    // Predicated region
    $region22: #{tpu_custom_call.1} parent=1 // pred_check
      _
    $region23: #{tpu_custom_call.1} parent=1 // pred_check_branch
      %66 = sbr.rel (0) target = $region25
    $region24: #{tpu_custom_call.1} parent=1 // pred_region
      %67 = dma.done [#allocation4], 32
    $region25: #{tpu_custom_call.1} parent=1 // pred_fallthru
      _
    %68 = vsyncpa [#allocation3], 1
    %69 = vsyncpa [#allocation6], 1
    %70 = vsyncpa [#allocation4], 1

</llo_original>
